<compile_context>
chip_gen: v6e
topology: v6e:2x2x1
jax: 0.10.0
libtpu: 0.0.40
codegen_flags: <defaults>
</compile_context>

<pallas_src>
import jax
import jax.numpy as jnp
from jax.experimental import pallas as pl
from jax.experimental.pallas import tpu as pltpu


W1_SHAPE = (2, 3)
W2_SHAPE = (3, 4)
_PACK_ROWS = W1_SHAPE[0] + W2_SHAPE[0]            # 5
_PACK_COLS = max(W1_SHAPE[1], W2_SHAPE[1])        # 4


# ----------------------------------------------------------------------------
# Pallas kernel: gridless tiny matmul on a single packed VMEM block.
#   packed_ref: (5, 4) f32
#     rows 0:2, cols 0:3  -> weight1  (2, 3)
#     rows 2:5, cols 0:4  -> weight2  (3, 4)
#   o_ref: (2, 4) f32 = weight1 @ weight2
# ----------------------------------------------------------------------------
def _packed_matmul_kernel(packed_ref, o_ref):
    a = packed_ref[0:W1_SHAPE[0], 0:W1_SHAPE[1]]          # (2, 3), static slice
    b = packed_ref[W1_SHAPE[0]:_PACK_ROWS, 0:W2_SHAPE[1]]  # (3, 4), static slice
    o_ref[...] = jnp.dot(a, b, preferred_element_type=jnp.float32)


def pallas_weight_product(w1: jax.Array, w2: jax.Array) -> jax.Array:
    """Compute w1 @ w2 for the tiny (2,3)x(3,4) case via one gridless Pallas call."""
    w1 = w1.astype(jnp.float32)
    w2 = w2.astype(jnp.float32)

    # Pack both operands into one staging array -> single input DMA.
    packed = jnp.zeros((_PACK_ROWS, _PACK_COLS), dtype=jnp.float32)
    packed = packed.at[0:W1_SHAPE[0], 0:W1_SHAPE[1]].set(w1)
    packed = packed.at[W1_SHAPE[0]:_PACK_ROWS, 0:W2_SHAPE[1]].set(w2)

    return pl.pallas_call(
        _packed_matmul_kernel,
        out_shape=jax.ShapeDtypeStruct((W1_SHAPE[0], W2_SHAPE[1]), jnp.float32),
        in_specs=[pl.BlockSpec(memory_space=pltpu.MemorySpace.VMEM)],
        out_specs=pl.BlockSpec(memory_space=pltpu.MemorySpace.VMEM),
    )(packed)


# ----------------------------------------------------------------------------
# "MyModel" equivalent: deterministic parameter init + forward
# ----------------------------------------------------------------------------
class MyModelPallas:
    def __init__(self, key):
        k1, k2 = jax.random.split(key)
        # torch.rand -> uniform [0, 1)
        self.weight1 = jax.random.uniform(k1, W1_SHAPE, dtype=jnp.float32)
        self.weight2 = jax.random.uniform(k2, W2_SHAPE, dtype=jnp.float32)
        # Both operands are model constants: run the Pallas kernel once at
        # init and cache the result (constant-fold per perf review).
        self.weight_product = pallas_weight_product(self.weight1, self.weight2)

    def forward(self, *inputs):
        # TODO(synk): the original PyTorch forward() body is `pass` (ignores
        # inputs, returns None); there is no computation to translate here.
        # The representative Pallas compute (weight1 @ weight2) is cached in
        # self.weight_product at __init__.
        del inputs  # unused, matching the original signature `forward(*input)`
        return None


if __name__ == "__main__":
    key = jax.random.PRNGKey(0)
    model = MyModelPallas(key)

    # Example input (unused by forward, kept for signature parity).
    x = jax.random.normal(jax.random.PRNGKey(1), (2, 3), dtype=jnp.float32)

    out = model.forward(x)
    assert out is None  # matches the original module's forward semantics

    # Block on and verify the Pallas-computed constant product.
    product = jax.block_until_ready(model.weight_product)
    ref = model.weight1 @ model.weight2
    assert product.shape == (2, 4)
    assert jnp.allclose(product, ref, atol=1e-5, rtol=1e-5)

    print("KERNEL_OK")
</pallas_src>

<mosaic_0001>
module attributes {stable_mosaic.version = 11 : i64} {
  func.func @_packed_matmul_kernel(%arg0: memref<5x4xf32, #tpu.memory_space<vmem>>, %arg1: memref<2x4xf32, #tpu.memory_space<vmem>>) attributes {dimension_semantics = [], scalar_prefetch = 0 : i64, scratch_operands = 0 : i64, tpu.core_type = #tpu.core_type<tc>} {
    %c0 = arith.constant 0 : index
    %c0_0 = arith.constant 0 : index
    %0 = vector.load %arg0[%c0, %c0_0] : memref<5x4xf32, #tpu.memory_space<vmem>>, vector<2x3xf32>
    %c2 = arith.constant 2 : index
    %c0_1 = arith.constant 0 : index
    %1 = vector.load %arg0[%c2, %c0_1] : memref<5x4xf32, #tpu.memory_space<vmem>>, vector<3x4xf32>
    %cst = arith.constant dense<0.000000e+00> : vector<2x4xf32>
    %2 = tpu.matmul %0, %1, %cst {dimension_numbers = #tpu.dot_dimension_numbers<[1], [0], [0], [1], [0, 0, 1, 1], [], []>} : vector<2x3xf32>, vector<3x4xf32>, vector<2x4xf32> -> vector<2x4xf32>
    %c0_2 = arith.constant 0 : index
    %c0_3 = arith.constant 0 : index
    %3 = vector.load %arg1[%c0_2, %c0_3] : memref<2x4xf32, #tpu.memory_space<vmem>>, vector<2x4xf32>
    tpu.vector_store %arg1[%c0_2, %c0_3], %2 {strides = array<i32>} : memref<2x4xf32, #tpu.memory_space<vmem>>, vector<2x4xf32>,
    return
  }
}

</mosaic_0001>

<llo_original>
// kernel: tpu_custom_call.1
$region0: #{tpu_custom_call.1}
  #allocation0 [shape = 'u32[]', space=smem, size = 0x4, offset = 0x4, fixed_abs, tag = 'smem constant byte address 0x4 - core index']
  #allocation1 [shape = 'u32[144,128]{1,0:T(1,128)}', space=vmem, size = 0x12000, scoped, tag = 'internal scratch']
  %s0 = inlined_call_operand.vmem [shape: f32[5,4], index: 0, kind: input, shape index: {}]
  %s1 = inlined_call_operand.hbm [shape: f32[2,4], index: 1, kind: output, shape index: {}]
  %s2 = sld [smem:[#allocation0]]
  $region14: #{tpu_custom_call.1} parent=0
    _
  %s4 = ssub.s32 1, %s2
  %s5 = scalar_select 0, %s4, %s2
  $region1: #{tpu_custom_call.1} parent=0
    #allocation2 [shape = 'u8[1024]{0}', space=vmem, size = 0x400, scoped, tag = 'output window, operand 0, single buffered']
    #allocation3 [shape = 's32[1]{0}', space=sflag, size = 0x4, scoped, tag = 'scoped memory for tpu_custom_call.1']
    %6 = vsyncpa [#allocation3], 0
    // Predicated region
    $region2: #{tpu_custom_call.1} parent=1 // pred_check
      _
    $region3: #{tpu_custom_call.1} parent=1 // pred_check_branch
      %8 = sbr.rel (0) target = $region5
    $region4: #{tpu_custom_call.1} parent=1 // pred_region
      _
    $region5: #{tpu_custom_call.1} parent=1 // pred_fallthru
      _
    %v9 = vld [vmem:[%s0] sm:$0x3]
    %v10 = vld [vmem:[%s0 + $0x2] sm:$0x7]
    %vm11 = vcmask 23552
    %v13 = vsel %vm11, %v9, 0
    %vm15 = vcmask 1042432
    %v17 = vsel %vm15, %v10, 0
    %19 = vmatprep.subr.mxu0 0.0
    %20 = vmatpush1.msra.mxu0 0.0
    %21 = vmatprep.subr.mxu0 0.0
    %22 = vmatpush1.msra.mxu0 0.0
    %23 = vmatprep.subr.mxu0 0.0
    %24 = vmatpush1.msra.mxu0 0.0
    %25 = vmatprep.subr.mxu0 0.0
    %26 = vmatpush1.msra.mxu0 0.0
    %27 = vmatprep.subr.mxu0 0.0
    %28 = vmatpush1.msra.mxu0 0.0
    %29 = vmatprep.subr.mxu0 0.0
    %30 = vmatpush1.msra.mxu0 0.0
    %31 = vmatprep.subr.mxu0 0.0
    %32 = vmatpush1.msra.mxu0 0.0
    %33 = vmatprep.subr.mxu0 0.0
    %34 = vmatpush1.msra.mxu0 0.0
    %35 = vmatprep.subr.mxu0 0.0
    %36 = vmatpush1.msra.mxu0 0.0
    %37 = vmatprep.subr.mxu0 0.0
    %38 = vmatpush1.msra.mxu0 0.0
    %39 = vmatprep.subr.mxu0 0.0
    %40 = vmatpush1.msra.mxu0 0.0
    %41 = vmatprep.subr.mxu0 0.0
    %42 = vmatpush1.msra.mxu0 0.0
    %43 = vmatprep.subr.mxu0 0.0
    %44 = vmatpush1.msra.mxu0 0.0
    %45 = vmatprep.subr.mxu0 0.0
    %46 = vmatpush1.msra.mxu0 0.0
    %47 = vmatprep.subr.mxu0 0.0
    %48 = vmatpush1.msra.mxu0 0.0
    %49 = vmatprep.subr.mxu0 0.0
    %50 = vmatpush1.msra.mxu0 %v17
    %51 = vmatprep.subr.mxu0 0.0
    %52 = vmatpush2.msra.mxu0 0.0
    %53 = vmatprep.subr.mxu0 0.0
    %54 = vmatpush2.msra.mxu0 0.0
    %55 = vmatprep.subr.mxu0 0.0
    %56 = vmatpush2.msra.mxu0 0.0
    %57 = vmatprep.subr.mxu0 0.0
    %58 = vmatpush2.msra.mxu0 0.0
    %59 = vmatprep.subr.mxu0 0.0
    %60 = vmatpush2.msra.mxu0 0.0
    %61 = vmatprep.subr.mxu0 0.0
    %62 = vmatpush2.msra.mxu0 0.0
    %63 = vmatprep.subr.mxu0 0.0
    %64 = vmatpush2.msra.mxu0 0.0
    %65 = vmatprep.subr.mxu0 0.0
    %66 = vmatpush2.msra.mxu0 0.0
    %67 = vmatprep.subr.mxu0 0.0
    %68 = vmatpush2.msra.mxu0 0.0
    %69 = vmatprep.subr.mxu0 0.0
    %70 = vmatpush2.msra.mxu0 0.0
    %71 = vmatprep.subr.mxu0 0.0
    %72 = vmatpush2.msra.mxu0 0.0
    %73 = vmatprep.subr.mxu0 0.0
    %74 = vmatpush2.msra.mxu0 0.0
    %75 = vmatprep.subr.mxu0 0.0
    %76 = vmatpush2.msra.mxu0 0.0
    %77 = vmatprep.subr.mxu0 0.0
    %78 = vmatpush2.msra.mxu0 0.0
    %79 = vmatprep.subr.mxu0 0.0
    %80 = vmatpush2.msra.mxu0 0.0
    %81 = vmatprep.subr.mxu0 0.0
    %82 = vmatpush2.msra.mxu0 0.0
    %83 = vmatprep.mubr.f32.mxu0 0.0
    %84 = vmatmul.mubr.f32.gmra.mxu0 %v13
    %v85 = vpop.f32.mrf.mxu0
    %v86 = vadd.f32 0.0, %v85
    %v87 = vpop.f32.mrf.mxu0
    %88 = vdwg.mxu0
    %vm89 = vcmask 25600
    %90 = vst.msk [vmem:[#allocation2] sm:$0x3] %vm89, %v86
    // Predicated region
    $region6: #{tpu_custom_call.1} parent=1 // pred_check
      _
    $region7: #{tpu_custom_call.1} parent=1 // pred_check_branch
      %92 = sbr.rel (0) target = $region9
    $region8: #{tpu_custom_call.1} parent=1 // pred_region
      %s94 = ssub.s32 32, 32
      %95 = vsyncadd [#allocation3], %s94
      %s97 = sshll.u32 [#allocation2], 4
      %s98 = int_to_ptr.vmem [resolvable:$true] %s97
      %100 = dma.vmem_to_hbm [thread:$0]  %s98, 32, %s1, [#allocation3]
    $region9: #{tpu_custom_call.1} parent=1 // pred_fallthru
      _
    // Predicated region
    $region10: #{tpu_custom_call.1} parent=1 // pred_check
      _
    $region11: #{tpu_custom_call.1} parent=1 // pred_check_branch
      %102 = sbr.rel (0) target = $region13
    $region12: #{tpu_custom_call.1} parent=1 // pred_region
      %103 = dma.done [#allocation3], 32
    $region13: #{tpu_custom_call.1} parent=1 // pred_fallthru
      _
    %104 = vsyncpa [#allocation3], 1

</llo_original>
